<compile_context>
chip_gen: v7x
topology: tpu7x:2x2x1
jax: 0.10.0
libtpu: 0.0.40
codegen_flags: <defaults>
</compile_context>

<pallas_src>
import jax
import jax.numpy as jnp
from jax import lax
from jax.experimental import pallas as pl
from jax.experimental.pallas import tpu as pltpu

_LANES = 128
_SUBLANES = 8
_EPS = 1e-5
_PAD_LOGIT = -1e9          # safe pad/mask logit: exp -> 0, x*t finite
_CHUNK_ROWS = 32           # 32x128 f32 = 4 vregs per intermediate -> no spills
_TARGET_TILE_ROWS = 4096   # 2 MiB per f32 input per buffer
_NUM_PARALLEL = 2          # megacore split for v7x; falls back to 1 if too small


def _cdiv(a, b):
    return -(-a // b)


def _round_up(n, m):
    return _cdiv(n, m) * m


def _make_kernel(tile_rows, chunk, rows_valid, steps, needs_mask):
    """Build the partial-sum kernel (all tiling parameters are static)."""
    num_chunks = tile_rows // chunk

    def kernel(x_ref, t_ref, out_ref):
        p = pl.program_id(0)
        i = pl.program_id(1)

        @pl.when(i == 0)
        def _init():
            out_ref[...] = jnp.zeros_like(out_ref)

        if needs_mask:
            block_row0 = (p * steps + i) * tile_rows
            row_iota = lax.broadcasted_iota(jnp.int32, (chunk, _LANES), 0)

        def fold(v):  # (chunk,128) -> (8,128): pure VPU adds along vreg stacks
            return v.reshape(chunk // _SUBLANES, _SUBLANES, _LANES).sum(axis=0)

        def chunk_body(c, carry):
            bce_acc, st_acc, s_acc, t_acc = carry
            start = pl.multiple_of(c * chunk, chunk)
            x = x_ref[pl.ds(start, chunk), :].astype(jnp.float32)
            t = t_ref[pl.ds(start, chunk), :].astype(jnp.float32)

            if needs_mask:
                # Mask tail rows BEFORE any math so garbage in the partial
                # last block cannot poison the sums.
                limit = rows_valid - block_row0 - start
                ok = row_iota < limit
                x = jnp.where(ok, x, _PAD_LOGIT)
                t = jnp.where(ok, t, 0.0)

            # e = exp(-|x|); sigmoid(x) = 1/(1+e) if x>=0 else e/(1+e)
            # bce(x,t) = max(x,0) - x*t + log1p(e)
            e = jnp.exp(-jnp.abs(x))
            d = 1.0 + e
            inv0 = pl.reciprocal(d, approx=True)
            inv = inv0 * (2.0 - d * inv0)          # one Newton-Raphson step
            sig = jnp.where(x >= 0.0, inv, e * inv)
            bce = jnp.maximum(x, 0.0) - x * t + jnp.log1p(e)

            return (bce_acc + fold(bce),
                    st_acc + fold(sig * t),
                    s_acc + fold(sig),
                    t_acc + fold(t))

        zeros = jnp.zeros((_SUBLANES, _LANES), jnp.float32)
        bce_p, st_p, s_p, t_p = lax.fori_loop(
            0, num_chunks, chunk_body, (zeros, zeros, zeros, zeros))

        out_ref[0] += bce_p
        out_ref[1] += st_p
        out_ref[2] += s_p
        out_ref[3] += t_p

    return kernel


def dice_loss(outputs, targets):
    """Pallas implementation of DiceLoss.forward(outputs, targets) -> scalar."""
    assert outputs.shape == targets.shape
    total = outputs.size

    flat_x = outputs.reshape(-1)
    flat_t = targets.reshape(-1)

    # Lane remainder only: pad to the next multiple of 128 (copy triggers only
    # when total % 128 != 0; the common NCHW case needs no pad at all).
    rows = _cdiv(total, _LANES)
    lane_pad = rows * _LANES - total
    if lane_pad:
        flat_x = jnp.pad(flat_x, (0, lane_pad), constant_values=_PAD_LOGIT)
        flat_t = jnp.pad(flat_t, (0, lane_pad), constant_values=0.0)
    x2d = flat_x.reshape(rows, _LANES)
    t2d = flat_t.reshape(rows, _LANES)

    def plan(npar):
        base = _round_up(_cdiv(rows, npar), _SUBLANES)
        if base >= _CHUNK_ROWS:
            tile = min(_TARGET_TILE_ROWS, _round_up(base, _CHUNK_ROWS))
            ch = _CHUNK_ROWS
        else:
            tile = base
            ch = base
        return tile, ch, _cdiv(rows, npar * tile)

    npar = _NUM_PARALLEL
    tile_rows, chunk, steps = plan(npar)
    # No block may start at/after the end of the array (fully-OOB DMA); for
    # small inputs, drop the parallel split instead.
    if (npar * steps - 1) * tile_rows >= rows:
        npar = 1
        tile_rows, chunk, steps = plan(npar)

    coverage = npar * steps * tile_rows
    needs_mask = coverage != rows

    kernel = _make_kernel(tile_rows, chunk, rows, steps, needs_mask)
    in_map = lambda p, i: (p * steps + i, 0)

    cost = pl.CostEstimate(
        flops=16 * rows * _LANES,
        transcendentals=3 * rows * _LANES,   # exp, log1p, reciprocal
        bytes_accessed=rows * _LANES * (x2d.dtype.itemsize + t2d.dtype.itemsize)
        + npar * 4 * _SUBLANES * _LANES * 4,
    )

    partials = pl.pallas_call(
        kernel,
        out_shape=jax.ShapeDtypeStruct(
            (npar * 4, _SUBLANES, _LANES), jnp.float32),
        grid_spec=pltpu.PrefetchScalarGridSpec(
            num_scalar_prefetch=0,
            grid=(npar, steps),
            in_specs=[
                pl.BlockSpec((tile_rows, _LANES), in_map),
                pl.BlockSpec((tile_rows, _LANES), in_map),
            ],
            out_specs=pl.BlockSpec((4, _SUBLANES, _LANES),
                                   lambda p, i: (p, 0, 0)),
        ),
        compiler_params=pltpu.CompilerParams(
            dimension_semantics=("parallel", "arbitrary"),
        ),
        cost_estimate=cost,
    )(x2d, t2d)

    # Tiny final reduction + scalar dice formula in plain JAX.
    sums = partials.reshape(npar, 4, _SUBLANES, _LANES).sum(axis=(0, 2, 3))
    bce_mean = sums[0] / jnp.float32(total)   # divide by the UNPADDED count
    dice = (2.0 * sums[1] + _EPS) / (sums[2] + sums[3] + _EPS)
    return bce_mean + 1.0 - dice


def dice_loss_ref(outputs, targets):
    x = outputs.astype(jnp.float32)
    t = targets.astype(jnp.float32)
    bce = jnp.mean(jnp.maximum(x, 0.0) - x * t + jnp.log1p(jnp.exp(-jnp.abs(x))))
    s = jax.nn.sigmoid(x)
    dice = (2.0 * jnp.sum(s * t) + _EPS) / (jnp.sum(s) + jnp.sum(t) + _EPS)
    return bce + 1.0 - dice


if __name__ == "__main__":
    key = jax.random.PRNGKey(0)
    k1, k2 = jax.random.split(key)
    # NCHW, as a PyTorch segmentation head would produce: (B=2, C=4, H=16, W=16)
    outputs = jax.random.normal(k1, (2, 4, 16, 16), dtype=jnp.float32)
    targets = (jax.random.uniform(k2, (2, 4, 16, 16)) > 0.5).astype(jnp.float32)

    loss = dice_loss(outputs, targets)
    loss = jax.block_until_ready(loss)

    ref = dice_loss_ref(outputs, targets)
    assert jnp.allclose(loss, ref, rtol=1e-5, atol=1e-5), (loss, ref)
    print("KERNEL_OK")
</pallas_src>

<mosaic_0001>
module attributes {stable_mosaic.version = 11 : i64} {
  func.func @kernel(%arg0: i32, %arg1: i32, %arg2: memref<8x128xf32, #tpu.memory_space<vmem>>, %arg3: memref<8x128xf32, #tpu.memory_space<vmem>>, %arg4: memref<4x8x128xf32, #tpu.memory_space<vmem>>) attributes {dimension_semantics = [#tpu.dimension_semantics<parallel>, #tpu.dimension_semantics<arbitrary>], iteration_bounds = array<i64: 2, 1>, scalar_prefetch = 0 : i64, scratch_operands = 0 : i64, tpu.core_type = #tpu.core_type<tc>, window_params = [{transform_indices = @transform_0, window_bounds = array<i64: 8, 128>}, {transform_indices = @transform_1, window_bounds = array<i64: 8, 128>}, {transform_indices = @transform_2, window_bounds = array<i64: 4, 8, 128>}]} {
    %c0_i32 = arith.constant 0 : i32
    %0 = arith.cmpi eq, %arg1, %c0_i32 : i32
    %1 = arith.extui %0 : i1 to i32
    %c0_i32_0 = arith.constant 0 : i32
    %2 = arith.cmpi ne, %1, %c0_i32_0 : i32
    scf.if %2 {
      %cst_33 = arith.constant 0.000000e+00 : f32
      %68 = vector.broadcast %cst_33 : f32 to vector<4x8x128xf32>
      %c0_34 = arith.constant 0 : index
      %c0_35 = arith.constant 0 : index
      %c0_36 = arith.constant 0 : index
      %69 = vector.load %arg4[%c0_34, %c0_35, %c0_36] : memref<4x8x128xf32, #tpu.memory_space<vmem>>, vector<4x8x128xf32>
      tpu.vector_store %arg4[%c0_34, %c0_35, %c0_36], %68 {strides = array<i32>} : memref<4x8x128xf32, #tpu.memory_space<vmem>>, vector<4x8x128xf32>,
    } else {
    }
    %cst = arith.constant 0.000000e+00 : f32
    %3 = vector.broadcast %cst : f32 to vector<8x128xf32>
    %c0_i32_1 = arith.constant 0 : i32
    %c8_i32 = arith.constant 8 : i32
    %4 = arith.muli %c0_i32_1, %c8_i32 : i32
    %5 = tpu.assume_multiple %4, 8 : i32
    %6 = arith.index_cast %5 : i32 to index
    %c0 = arith.constant 0 : index
    %7 = vector.load %arg2[%6, %c0] : memref<8x128xf32, #tpu.memory_space<vmem>>, vector<8x128xf32>
    %8 = arith.index_cast %5 : i32 to index
    %c0_2 = arith.constant 0 : index
    %9 = vector.load %arg3[%8, %c0_2] : memref<8x128xf32, #tpu.memory_space<vmem>>, vector<8x128xf32>
    %10 = math.absf %7 : vector<8x128xf32>
    %cst_3 = arith.constant 0.000000e+00 : f32
    %11 = vector.broadcast %cst_3 : f32 to vector<8x128xf32>
    %12 = arith.subf %11, %10 : vector<8x128xf32>
    %13 = math.exp %12 : vector<8x128xf32>
    %cst_4 = arith.constant 1.000000e+00 : f32
    %14 = vector.broadcast %cst_4 : f32 to vector<8x128xf32>
    %15 = arith.addf %14, %13 : vector<8x128xf32>
    %16 = tpu.reciprocal %15 {approx = true} : vector<8x128xf32> -> vector<8x128xf32>
    %17 = arith.mulf %15, %16 : vector<8x128xf32>
    %cst_5 = arith.constant 2.000000e+00 : f32
    %18 = vector.broadcast %cst_5 : f32 to vector<8x128xf32>
    %19 = arith.subf %18, %17 : vector<8x128xf32>
    %20 = arith.mulf %16, %19 : vector<8x128xf32>
    %cst_6 = arith.constant 0.000000e+00 : f32
    %21 = vector.broadcast %cst_6 : f32 to vector<8x128xf32>
    %22 = arith.cmpf oge, %7, %21 : vector<8x128xf32>
    %23 = arith.mulf %13, %20 : vector<8x128xf32>
    %24 = arith.select %22, %20, %23 : vector<8x128xi1>, vector<8x128xf32>
    %cst_7 = arith.constant 0.000000e+00 : f32
    %25 = vector.broadcast %cst_7 : f32 to vector<8x128xf32>
    %26 = arith.maximumf %7, %25 : vector<8x128xf32>
    %27 = arith.mulf %7, %9 : vector<8x128xf32>
    %28 = arith.subf %26, %27 : vector<8x128xf32>
    %29 = math.log1p %13 : vector<8x128xf32>
    %30 = arith.addf %28, %29 : vector<8x128xf32>
    %31 = vector.shape_cast %30 : vector<8x128xf32> to vector<1x8x128xf32>
    %cst_8 = arith.constant dense<0.000000e+00> : vector<8x128xf32>
    %32 = vector.multi_reduction <add>, %31, %cst_8 [0] : vector<1x8x128xf32> to vector<8x128xf32>
    %33 = arith.addf %3, %32 : vector<8x128xf32>
    %34 = arith.mulf %24, %9 : vector<8x128xf32>
    %35 = vector.shape_cast %34 : vector<8x128xf32> to vector<1x8x128xf32>
    %cst_9 = arith.constant dense<0.000000e+00> : vector<8x128xf32>
    %36 = vector.multi_reduction <add>, %35, %cst_9 [0] : vector<1x8x128xf32> to vector<8x128xf32>
    %37 = arith.addf %3, %36 : vector<8x128xf32>
    %38 = vector.shape_cast %24 : vector<8x128xf32> to vector<1x8x128xf32>
    %cst_10 = arith.constant dense<0.000000e+00> : vector<8x128xf32>
    %39 = vector.multi_reduction <add>, %38, %cst_10 [0] : vector<1x8x128xf32> to vector<8x128xf32>
    %40 = arith.addf %3, %39 : vector<8x128xf32>
    %41 = vector.shape_cast %9 : vector<8x128xf32> to vector<1x8x128xf32>
    %cst_11 = arith.constant dense<0.000000e+00> : vector<8x128xf32>
    %42 = vector.multi_reduction <add>, %41, %cst_11 [0] : vector<1x8x128xf32> to vector<8x128xf32>
    %43 = arith.addf %3, %42 : vector<8x128xf32>
    %c1_i32 = arith.constant 1 : i32
    %c0_12 = arith.constant 0 : index
    %c0_13 = arith.constant 0 : index
    %c0_14 = arith.constant 0 : index
    %44 = vector.load %arg4[%c0_12, %c0_13, %c0_14] : memref<4x8x128xf32, #tpu.memory_space<vmem>>, vector<1x8x128xf32>
    %45 = vector.shape_cast %44 : vector<1x8x128xf32> to vector<8x128xf32>
    %46 = arith.addf %45, %33 : vector<8x128xf32>
    %c0_15 = arith.constant 0 : index
    %c0_16 = arith.constant 0 : index
    %c0_17 = arith.constant 0 : index
    %47 = vector.load %arg4[%c0_15, %c0_16, %c0_17] : memref<4x8x128xf32, #tpu.memory_space<vmem>>, vector<1x8x128xf32>
    %48 = vector.shape_cast %47 : vector<1x8x128xf32> to vector<8x128xf32>
    %49 = vector.shape_cast %46 : vector<8x128xf32> to vector<1x8x128xf32>
    tpu.vector_store %arg4[%c0_15, %c0_16, %c0_17], %49 {strides = array<i32>} : memref<4x8x128xf32, #tpu.memory_space<vmem>>, vector<1x8x128xf32>,
    %c1 = arith.constant 1 : index
    %c0_18 = arith.constant 0 : index
    %c0_19 = arith.constant 0 : index
    %50 = vector.load %arg4[%c1, %c0_18, %c0_19] : memref<4x8x128xf32, #tpu.memory_space<vmem>>, vector<1x8x128xf32>
    %51 = vector.shape_cast %50 : vector<1x8x128xf32> to vector<8x128xf32>
    %52 = arith.addf %51, %37 : vector<8x128xf32>
    %c1_20 = arith.constant 1 : index
    %c0_21 = arith.constant 0 : index
    %c0_22 = arith.constant 0 : index
    %53 = vector.load %arg4[%c1_20, %c0_21, %c0_22] : memref<4x8x128xf32, #tpu.memory_space<vmem>>, vector<1x8x128xf32>
    %54 = vector.shape_cast %53 : vector<1x8x128xf32> to vector<8x128xf32>
    %55 = vector.shape_cast %52 : vector<8x128xf32> to vector<1x8x128xf32>
    tpu.vector_store %arg4[%c1_20, %c0_21, %c0_22], %55 {strides = array<i32>} : memref<4x8x128xf32, #tpu.memory_space<vmem>>, vector<1x8x128xf32>,
    %c2 = arith.constant 2 : index
    %c0_23 = arith.constant 0 : index
    %c0_24 = arith.constant 0 : index
    %56 = vector.load %arg4[%c2, %c0_23, %c0_24] : memref<4x8x128xf32, #tpu.memory_space<vmem>>, vector<1x8x128xf32>
    %57 = vector.shape_cast %56 : vector<1x8x128xf32> to vector<8x128xf32>
    %58 = arith.addf %57, %40 : vector<8x128xf32>
    %c2_25 = arith.constant 2 : index
    %c0_26 = arith.constant 0 : index
    %c0_27 = arith.constant 0 : index
    %59 = vector.load %arg4[%c2_25, %c0_26, %c0_27] : memref<4x8x128xf32, #tpu.memory_space<vmem>>, vector<1x8x128xf32>
    %60 = vector.shape_cast %59 : vector<1x8x128xf32> to vector<8x128xf32>
    %61 = vector.shape_cast %58 : vector<8x128xf32> to vector<1x8x128xf32>
    tpu.vector_store %arg4[%c2_25, %c0_26, %c0_27], %61 {strides = array<i32>} : memref<4x8x128xf32, #tpu.memory_space<vmem>>, vector<1x8x128xf32>,
    %c3 = arith.constant 3 : index
    %c0_28 = arith.constant 0 : index
    %c0_29 = arith.constant 0 : index
    %62 = vector.load %arg4[%c3, %c0_28, %c0_29] : memref<4x8x128xf32, #tpu.memory_space<vmem>>, vector<1x8x128xf32>
    %63 = vector.shape_cast %62 : vector<1x8x128xf32> to vector<8x128xf32>
    %64 = arith.addf %63, %43 : vector<8x128xf32>
    %c3_30 = arith.constant 3 : index
    %c0_31 = arith.constant 0 : index
    %c0_32 = arith.constant 0 : index
    %65 = vector.load %arg4[%c3_30, %c0_31, %c0_32] : memref<4x8x128xf32, #tpu.memory_space<vmem>>, vector<1x8x128xf32>
    %66 = vector.shape_cast %65 : vector<1x8x128xf32> to vector<8x128xf32>
    %67 = vector.shape_cast %64 : vector<8x128xf32> to vector<1x8x128xf32>
    tpu.vector_store %arg4[%c3_30, %c0_31, %c0_32], %67 {strides = array<i32>} : memref<4x8x128xf32, #tpu.memory_space<vmem>>, vector<1x8x128xf32>,
    return
  }
  func.func @transform_0(%arg0: i32, %arg1: i32) -> (i32, i32) {
    %c1_i32 = arith.constant 1 : i32
    %0 = arith.muli %arg0, %c1_i32 : i32
    %1 = arith.addi %0, %arg1 : i32
    %c0_i32 = arith.constant 0 : i32
    %c0_i32_0 = arith.constant 0 : i32
    return %1, %c0_i32 : i32, i32
  }
  func.func @transform_1(%arg0: i32, %arg1: i32) -> (i32, i32) {
    %c1_i32 = arith.constant 1 : i32
    %0 = arith.muli %arg0, %c1_i32 : i32
    %1 = arith.addi %0, %arg1 : i32
    %c0_i32 = arith.constant 0 : i32
    %c0_i32_0 = arith.constant 0 : i32
    return %1, %c0_i32 : i32, i32
  }
  func.func @transform_2(%arg0: i32, %arg1: i32) -> (i32, i32, i32) {
    %c0_i32 = arith.constant 0 : i32
    %c0_i32_0 = arith.constant 0 : i32
    %c0_i32_1 = arith.constant 0 : i32
    return %arg0, %c0_i32, %c0_i32_0 : i32, i32, i32
  }
}

</mosaic_0001>

<llo_original>
// kernel: tpu_custom_call.1
$region0: #{tpu_custom_call.1}
  #allocation0 [shape = 'u32[]', space=smem, size = 0x4, offset = 0x4, fixed_abs, tag = 'smem constant byte address 0x4 - core index']
  #allocation1 [shape = 'u32[144,128]{1,0:T(1,128)}', space=vmem, size = 0x12000, scoped, tag = 'internal scratch']
  %s0 = inlined_call_operand.hbm [shape: f32[16,128], index: 0, kind: input, shape index: {}]
  %s1 = inlined_call_operand.hbm [shape: f32[16,128], index: 1, kind: input, shape index: {}]
  %s2 = inlined_call_operand.hbm [shape: f32[8,8,128], index: 2, kind: output, shape index: {}]
  %s3 = sld [smem:[#allocation0]]
  $region53: #{tpu_custom_call.1} parent=0
    _
  %s5 = ssub.s32 1, %s3
  %s6 = scalar_select 0, %s5, %s3
  $region1: #{tpu_custom_call.1} parent=0
    #allocation2 [shape = 'u8[8192]{0}', space=vmem, size = 0x2000, scoped, tag = 'input window, operand 0']
    #allocation3 [shape = 's32[2]{0}', space=sflag, size = 0x8, scoped, tag = 'scoped memory for tpu_custom_call.1']
    #allocation4 [shape = 's32[2]{0}', space=sflag, size = 0x8, scoped, tag = 'scoped memory for tpu_custom_call.1']
    #allocation5 [shape = 'u8[8192]{0}', space=vmem, size = 0x2000, scoped, tag = 'input window, operand 1']
    #allocation6 [shape = 's32[2]{0}', space=sflag, size = 0x8, scoped, tag = 'scoped memory for tpu_custom_call.1']
    #allocation7 [shape = 'u8[32768]{0}', space=vmem, size = 0x8000, scoped, tag = 'output window, operand 0']
    %7 = vsyncpa [#allocation3], 0
    %s8 = scalar_lea.sflag [#allocation3], 1
    %9 = vsyncpa %s8, 0
    %10 = vsyncpa [#allocation6], 0
    %s11 = scalar_lea.sflag [#allocation6], 1
    %12 = vsyncpa %s11, 0
    %13 = vsyncpa [#allocation4], 0
    %s14 = scalar_lea.sflag [#allocation4], 1
    %15 = vsyncpa %s14, 0
    loop: start=0, step=1, limit=4
    $region2: #{tpu_custom_call.1} parent=1 // loop_pre_header
      _
    $region3: #{tpu_custom_call.1} parent=1 // loop_header
      %s17 = sphi 0, %s21
      %p18 = scmp.ge.s32.totalorder %s17, 4
      %s24 = sphi 0, %s36
      %s25 = sphi 0, %s32
      %s26 = sphi 0, %s24
      %s27 = sphi 0, %s25
      %s28 = sphi 0, %s26
      %s29 = sphi 0, %s27
      %s41 = sphi 0, %s43
      %s44 = sphi 0, %s41
      %s45 = sphi 0, %s44
      %s61 = sphi 0, %s45
      %s69 = sphi 0, %s71
      %s72 = sphi 0, %s69
      %s73 = sphi 0, %s72
      %s89 = sphi 0, %s73
      %s95 = sphi 0, %s97
      %s98 = sphi 0, %s95
      %s99 = sphi 0, %s98
      %s115 = sphi 0, %s99
    $region4: #{tpu_custom_call.1} parent=1 // loop_header_branch
      %20 = sbr.rel (%p18) target = $region8
    $region5: #{tpu_custom_call.1} parent=1 // loop_body
      %s22 = ssub.s32 %s17, 1
      %s23 = ssub.s32 %s17, 2
      %s30 = sadd.s32 1, %s25
      %p31 = scmp.ge.s32.totalorder %s30, 1
      %s32 = scalar_select %p31, 0, %s30
      %s33 = sadd.s32 1, %s24
      %s34 = scalar_select %p31, %s33, %s24
      %p35 = scmp.ge.s32.totalorder %s34, 2
      %s36 = scalar_select %p35, 0, %s34
      %s37 = sadd.s32 %s24, %s25
      %s38 = sadd.s32 %s36, %s32
      %s39 = ssub.s32 %s37, %s38
      %p40 = scmp.eq.s32.totalorder %s39, 0
      %s42 = sadd.s32 %s41, 1
      %s43 = scalar_select %p40, %s41, %s42
      %p46 = pneg %p40
      %p47 = scmp.eq.s32.totalorder %s17, 1
      %p48 = por %p46, %p47
      %p49 = scmp.ne.s32.totalorder %s41, %s44
      %p50 = scmp.eq.s32.totalorder %s17, 0
      %p51 = por %p49, %p50
      %p52 = scmp.ne.s32.totalorder %s41, %s44
      %p53 = scmp.eq.s32.totalorder %s22, 1
      %p54 = por %p52, %p53
      %p55 = scmp.ne.s32.totalorder %s44, %s45
      %p56 = scmp.eq.s32.totalorder %s22, 0
      %p57 = por %p55, %p56
      %p58 = scmp.ne.s32.totalorder %s44, %s45
      %p59 = scmp.eq.s32.totalorder %s23, 1
      %p60 = por %p58, %p59
      %p62 = scmp.ne.s32.totalorder %s45, %s61
      %p63 = scmp.eq.s32.totalorder %s23, 0
      %p64 = por %p62, %p63
      %s65 = sadd.s32 %s24, %s25
      %s66 = sadd.s32 %s36, %s32
      %s67 = ssub.s32 %s65, %s66
      %p68 = scmp.eq.s32.totalorder %s67, 0
      %s70 = sadd.s32 %s69, 1
      %s71 = scalar_select %p68, %s69, %s70
      %p74 = pneg %p68
      %p75 = scmp.eq.s32.totalorder %s17, 1
      %p76 = por %p74, %p75
      %p77 = scmp.ne.s32.totalorder %s69, %s72
      %p78 = scmp.eq.s32.totalorder %s17, 0
      %p79 = por %p77, %p78
      %p80 = scmp.ne.s32.totalorder %s69, %s72
      %p81 = scmp.eq.s32.totalorder %s22, 1
      %p82 = por %p80, %p81
      %p83 = scmp.ne.s32.totalorder %s72, %s73
      %p84 = scmp.eq.s32.totalorder %s22, 0
      %p85 = por %p83, %p84
      %p86 = scmp.ne.s32.totalorder %s72, %s73
      %p87 = scmp.eq.s32.totalorder %s23, 1
      %p88 = por %p86, %p87
      %p90 = scmp.ne.s32.totalorder %s73, %s89
      %p91 = scmp.eq.s32.totalorder %s23, 0
      %p92 = por %p90, %p91
      %s93 = ssub.s32 %s24, %s36
      %p94 = scmp.eq.s32.totalorder %s93, 0
      %s96 = sadd.s32 %s95, 1
      %s97 = scalar_select %p94, %s95, %s96
      %p100 = pneg %p94
      %p101 = scmp.eq.s32.totalorder %s17, 1
      %p102 = por %p100, %p101
      %p103 = scmp.ne.s32.totalorder %s95, %s98
      %p104 = scmp.eq.s32.totalorder %s17, 0
      %p105 = por %p103, %p104
      %p106 = scmp.ne.s32.totalorder %s95, %s98
      %p107 = scmp.eq.s32.totalorder %s22, 1
      %p108 = por %p106, %p107
      %p109 = scmp.ne.s32.totalorder %s98, %s99
      %p110 = scmp.eq.s32.totalorder %s22, 0
      %p111 = por %p109, %p110
      %p112 = scmp.ne.s32.totalorder %s98, %s99
      %p113 = scmp.eq.s32.totalorder %s23, 1
      %p114 = por %p112, %p113
      %p116 = scmp.ne.s32.totalorder %s99, %s115
      %p117 = scmp.eq.s32.totalorder %s23, 0
      %p118 = por %p116, %p117
      %p119 = scmp.le.s32.totalorder 1, %s17
      %p120 = scmp.lt.s32.totalorder %s17, 3
      %p121 = pnand %p119, %p120
      %p122 = pneg %p121
      // Predicated region
      $region9: #{tpu_custom_call.1} parent=5 // pred_check
        _
      $region10: #{tpu_custom_call.1} parent=5 // pred_check_branch
        %124 = sbr.rel (%p121) target = $region12
      $region11: #{tpu_custom_call.1} parent=5 // pred_region
        %s125 = ssub.s32 %s17, 1
      $region12: #{tpu_custom_call.1} parent=5 // pred_fallthru
        _
      %p126 = scmp.lt.s32.totalorder %s17, 2
      // Predicated region
      $region13: #{tpu_custom_call.1} parent=5 // pred_check
        %p127 = pneg %p126
      $region14: #{tpu_custom_call.1} parent=5 // pred_check_branch
        %129 = sbr.rel (%p127) target = $region16
      $region15: #{tpu_custom_call.1} parent=5 // pred_region
        // Predicated region
        $region17: #{tpu_custom_call.1} parent=15 // pred_check
          %p130 = pneg %p51
        $region18: #{tpu_custom_call.1} parent=15 // pred_check_branch
          %132 = sbr.rel (%p130) target = $region20
        $region19: #{tpu_custom_call.1} parent=15 // pred_region
          %s133 = sand.u32 %s41, 1
          %s134 = scalar_lea.sflag [#allocation3], %s133
          %s135 = sand.u32 %s41, 1
          %s136 = smul.addr %s135, 8
          %s137 = scalar_lea.vmem [#allocation2], %s136
          %s138 = sadd.s32 %s24, %s25
          %s140 = ssub.s32 128, 128
          %141 = vsyncadd %s134, %s140
          %s142 = smul.addr %s138, 128
          %s143 = scalar_lea.hbm %s0, %s142
          %s145 = sshll.u32 %s137, 4
          %s146 = int_to_ptr.vmem [resolvable:$true] %s145
          %148 = dma.hbm_to_vmem [thread:$0]  %s143, 128, %s146, %s134
        $region20: #{tpu_custom_call.1} parent=15 // pred_fallthru
          _
        // Predicated region
        $region21: #{tpu_custom_call.1} parent=15 // pred_check
          %p149 = pneg %p79
        $region22: #{tpu_custom_call.1} parent=15 // pred_check_branch
          %151 = sbr.rel (%p149) target = $region24
        $region23: #{tpu_custom_call.1} parent=15 // pred_region
          %s152 = sand.u32 %s69, 1
          %s153 = scalar_lea.sflag [#allocation6], %s152
          %s154 = sand.u32 %s69, 1
          %s155 = smul.addr %s154, 8
          %s156 = scalar_lea.vmem [#allocation5], %s155
          %s157 = sadd.s32 %s24, %s25
          %s159 = ssub.s32 128, 128
          %160 = vsyncadd %s153, %s159
          %s161 = smul.addr %s157, 128
          %s162 = scalar_lea.hbm %s1, %s161
          %s164 = sshll.u32 %s156, 4
          %s165 = int_to_ptr.vmem [resolvable:$true] %s164
          %167 = dma.hbm_to_vmem [thread:$0]  %s162, 128, %s165, %s153
        $region24: #{tpu_custom_call.1} parent=15 // pred_fallthru
          _
      $region16: #{tpu_custom_call.1} parent=5 // pred_fallthru
        _
      %p168 = scmp.le.s32.totalorder 1, %s17
      %p169 = scmp.lt.s32.totalorder %s17, 3
      %p170 = pnand %p168, %p169
      %p171 = pneg %p170
      // Predicated region
      $region25: #{tpu_custom_call.1} parent=5 // pred_check
        _
      $region26: #{tpu_custom_call.1} parent=5 // pred_check_branch
        %173 = sbr.rel (%p170) target = $region28
      $region27: #{tpu_custom_call.1} parent=5 // pred_region
        %s174 = ssub.s32 %s17, 1
        %s175 = sand.u32 %s44, 1
        %s176 = scalar_lea.sflag [#allocation3], %s175
        %s177 = sand.u32 %s44, 1
        %s178 = smul.addr %s177, 8
        %s179 = scalar_lea.vmem [#allocation2], %s178
        // Predicated region
        $region29: #{tpu_custom_call.1} parent=27 // pred_check
          %p180 = pneg %p57
        $region30: #{tpu_custom_call.1} parent=27 // pred_check_branch
          %182 = sbr.rel (%p180) target = $region32
        $region31: #{tpu_custom_call.1} parent=27 // pred_region
          %183 = dma.done %s176, 128
        $region32: #{tpu_custom_call.1} parent=27 // pred_fallthru
          _
        %s184 = sand.u32 %s72, 1
        %s185 = scalar_lea.sflag [#allocation6], %s184
        %s186 = sand.u32 %s72, 1
        %s187 = smul.addr %s186, 8
        %s188 = scalar_lea.vmem [#allocation5], %s187
        // Predicated region
        $region33: #{tpu_custom_call.1} parent=27 // pred_check
          %p189 = pneg %p85
        $region34: #{tpu_custom_call.1} parent=27 // pred_check_branch
          %191 = sbr.rel (%p189) target = $region36
        $region35: #{tpu_custom_call.1} parent=27 // pred_region
          %192 = dma.done %s185, 128
        $region36: #{tpu_custom_call.1} parent=27 // pred_fallthru
          _
        %s193 = sand.u32 %s44, 1
        %s194 = scalar_lea.sflag [#allocation3], %s193
        %s195 = sand.u32 %s44, 1
        %s196 = smul.addr %s195, 8
        %s197 = scalar_lea.vmem [#allocation2], %s196
        %p198 = pneg %p57
        %p199 = pneg %p54
        %s200 = sand.u32 %s72, 1
        %s201 = scalar_lea.sflag [#allocation6], %s200
        %s202 = sand.u32 %s72, 1
        %s203 = smul.addr %s202, 8
        %s204 = scalar_lea.vmem [#allocation5], %s203
        %p205 = pneg %p85
        %p206 = pneg %p82
        %p207 = pneg %p111
        %p208 = pneg %p108
        %s209 = sand.u32 %s98, 1
        %s210 = scalar_lea.sflag [#allocation4], %s209
        %s211 = sand.u32 %s98, 1
        %s212 = smul.addr %s211, 32
        %s213 = scalar_lea.vmem [#allocation7], %s212
        %s214 = sadd.s32 %s26, %s27
        %s215 = sadd.s32 %s26, %s27
        %s216 = smul.u32 4, %s26
        %p217 = scmp.eq.s32.totalorder %s27, 0
        // Predicated region
        $region37: #{tpu_custom_call.1} parent=27 // pred_check
          %p218 = pneg %p217
        $region38: #{tpu_custom_call.1} parent=27 // pred_check_branch
          %220 = sbr.rel (%p218) target = $region40
        $region39: #{tpu_custom_call.1} parent=27 // pred_region
          %221 = vst [vmem:[%s213] sm:$0xff] 0.0
          %222 = vst [vmem:[%s213 + $0x8] sm:$0xff] 0.0
          %223 = vst [vmem:[%s213 + $0x10] sm:$0xff] 0.0
          %224 = vst [vmem:[%s213 + $0x18] sm:$0xff] 0.0
        $region40: #{tpu_custom_call.1} parent=27 // pred_fallthru
          _
        %v225 = vld [vmem:[%s179] sm:$0xff]
        %v226 = vld [vmem:[%s188] sm:$0xff]
        %v227 = vand.u32 2147483647, %v225
        %v228 = vsub.f32 0.0, %v227
        %v229 = vmul.f32 %v228, 1.442695
        %v230 = vpow.pop %v229
        %v231 = vadd.f32 %v230, 1.0
        %v232 = vrcp.pop %v231
        %v233 = vmul.f32 %v231, %v232
        %v234 = vsub.f32 2.0, %v233
        %v235 = vmul.f32 %v232, %v234
        %vm236 = vcmp.ge.f32.partialorder %v225, 0.0
        %v237 = vmul.f32 %v230, %v235
        %v238 = vsel %vm236, %v235, %v237
        %v239 = vmax.f32 %v225, 0.0
        %v240 = vmul.f32 %v225, %v226
        %v241 = vsub.f32 %v239, %v240
        %v242 = vadd.f32 %v230, 1.0
        %v243 = vlog2.pop %v242
        %v244 = vmul.f32 %v243, 0.6931472
        %v245 = vmul.f32 -0.5, %v230
        %v246 = vadd.f32 %v245, 1.0
        %v247 = vmul.f32 %v246, %v230
        %v248 = vand.u32 2147483647, %v230
        %vm249 = vcmp.lt.f32.partialorder %v248, 0.0004427343
        %v250 = vsel %vm249, %v247, %v244
        %v251 = vadd.f32 %v241, %v250
        %v252 = vadd.f32 %v251, 0.0
        %v253 = vadd.f32 %v252, 0.0
        %v254 = vmul.f32 %v238, %v226
        %v255 = vadd.f32 %v254, 0.0
        %v256 = vadd.f32 %v255, 0.0
        %v257 = vadd.f32 %v238, 0.0
        %v258 = vadd.f32 %v257, 0.0
        %v259 = vadd.f32 %v226, 0.0
        %v260 = vadd.f32 %v259, 0.0
        %v261 = vld [vmem:[%s213] sm:$0xff]
        %v262 = vadd.f32 %v261, %v253
        %263 = vst [vmem:[%s213] sm:$0xff] %v262
        %s264 = scalar_lea.vmem %s213, 8 [#allocation7]
        %v265 = vld [vmem:[%s264] sm:$0xff]
        %v266 = vadd.f32 %v265, %v256
        %267 = vst [vmem:[%s264] sm:$0xff] %v266
        %s268 = scalar_lea.vmem %s213, 16 [#allocation7]
        %v269 = vld [vmem:[%s268] sm:$0xff]
        %v270 = vadd.f32 %v269, %v258
        %271 = vst [vmem:[%s268] sm:$0xff] %v270
        %s272 = scalar_lea.vmem %s213, 24 [#allocation7]
        %v273 = vld [vmem:[%s272] sm:$0xff]
        %v274 = vadd.f32 %v273, %v260
        %275 = vst [vmem:[%s272] sm:$0xff] %v274
        %s276 = sand.u32 %s98, 1
        %s277 = scalar_lea.sflag [#allocation4], %s276
        %s278 = sand.u32 %s98, 1
        %s279 = smul.addr %s278, 32
        %s280 = scalar_lea.vmem [#allocation7], %s279
        // Predicated region
        $region41: #{tpu_custom_call.1} parent=27 // pred_check
          %p281 = pneg %p108
        $region42: #{tpu_custom_call.1} parent=27 // pred_check_branch
          %283 = sbr.rel (%p281) target = $region44
        $region43: #{tpu_custom_call.1} parent=27 // pred_region
          %s284 = smul.u32 4, %s26
          %s286 = ssub.s32 512, 512
          %287 = vsyncadd %s277, %s286
          %s288 = smul.addr %s284, 128
          %s289 = scalar_lea.hbm %s2, %s288
          %s290 = sshll.u32 %s280, 4
          %s291 = int_to_ptr.vmem [resolvable:$true] %s290
          %296 = dma.vmem_to_hbm [thread:$0]  %s291, 512, %s289, %s277, 128, 128, 8
        $region44: #{tpu_custom_call.1} parent=27 // pred_fallthru
          _
      $region28: #{tpu_custom_call.1} parent=5 // pred_fallthru
        _
      %p297 = scmp.le.s32.totalorder 2, %s17
      // Predicated region
      $region45: #{tpu_custom_call.1} parent=5 // pred_check
        %p298 = pneg %p297
      $region46: #{tpu_custom_call.1} parent=5 // pred_check_branch
        %300 = sbr.rel (%p298) target = $region48
      $region47: #{tpu_custom_call.1} parent=5 // pred_region
        %s301 = ssub.s32 %s17, 2
        // Predicated region
        $region49: #{tpu_custom_call.1} parent=47 // pred_check
          %p302 = pneg %p114
        $region50: #{tpu_custom_call.1} parent=47 // pred_check_branch
          %304 = sbr.rel (%p302) target = $region52
        $region51: #{tpu_custom_call.1} parent=47 // pred_region
          %s305 = sand.u32 %s99, 1
          %s306 = scalar_lea.sflag [#allocation4], %s305
          %s307 = sand.u32 %s99, 1
          %s308 = smul.addr %s307, 32
          %s309 = scalar_lea.vmem [#allocation7], %s308
          %310 = dma.done %s306, 512
        $region52: #{tpu_custom_call.1} parent=47 // pred_fallthru
          _
      $region48: #{tpu_custom_call.1} parent=5 // pred_fallthru
        _
    $region6: #{tpu_custom_call.1} parent=1 // loop_footer
      %s21 = sadd.s32 1, %s17
    $region7: #{tpu_custom_call.1} parent=1 // loop_footer_branch
      %16 = sbr.rel target = $region3
    $region8: #{tpu_custom_call.1} parent=1 // loop_exit
      _
    %311 = vsyncpa [#allocation3], 1
    %s312 = scalar_lea.sflag [#allocation3], 1
    %313 = vsyncpa %s312, 1
    %314 = vsyncpa [#allocation6], 1
    %s315 = scalar_lea.sflag [#allocation6], 1
    %316 = vsyncpa %s315, 1
    %317 = vsyncpa [#allocation4], 1
    %s318 = scalar_lea.sflag [#allocation4], 1
    %319 = vsyncpa %s318, 1

</llo_original>
